<compile_context>
chip_gen: v7x
topology: tpu7x:2x2x1
jax: 0.10.0
libtpu: 0.0.40
codegen_flags: <defaults>
</compile_context>

<pallas_src>
import math
from functools import partial

import jax
import jax.numpy as jnp
from jax.experimental import pallas as pl
from jax.experimental.pallas import tpu as pltpu


def _round_up(v, m):
    return -(-v // m) * m


def _vmem_budget_bytes():
    """~3/4 of per-core VMEM capacity; conservative 48 MiB fallback (v7x-safe)."""
    cap = 64 * 1024 * 1024
    try:
        info = pltpu.get_tpu_info()
        cap = int(getattr(info, "vmem_capacity_bytes", cap))
    except Exception:
        pass
    return min((cap * 3) // 4, 100 * 1024 * 1024)


def _pick_tn(N, M, C, c8, c2, r_tot, itemsize, budget):
    """Largest lane-dense N tile whose per-step VMEM footprint fits the budget."""
    def est(t):
        io_blocks = 2 * (2 * C * t) * itemsize           # x + out tiles (double-buffered)
        pg_block = 2 * (r_tot * M) * itemsize            # pooled slab (double-buffered)
        weights = 2 * (c8 * C + C * c2 + 16 * C) * itemsize
        temps = (2 * M * t + r_tot * t + 3 * C * t) * 4  # f32 s/p/o_aug/theta/o temporaries
        return io_blocks + pg_block + weights + temps

    cands = [t for t in (2048, 1024, 512, 256, 128) if N % t == 0]
    if not cands:
        divs = set()
        d = 1
        while d * d <= N:
            if N % d == 0:
                divs.add(d)
                divs.add(N // d)
            d += 1
        cands = sorted(divs, reverse=True)
    for t in cands:
        if est(t) <= budget:
            return t
    return cands[-1]


def _pooled_proj_kernel(ones_row, w_ref, xwin_ref, pg_ref):
    # w_ref:    (R_TOT, C)  padded [w_phi; 0; w_g; 0]
    # xwin_ref: (1, 4, C, M) 2x2-window-decomposed x for this batch
    # pg_ref:   (1, R_TOT, M) output slab in the compute dtype
    # 1x1 conv fused with 2x2/stride-2 max-pool: conv each of the four window
    # offsets (conv is linear), then elementwise max. One concatenated weight
    # -> 4 matmuls total instead of 8.
    acc = None
    for k in range(4):
        xk = xwin_ref[0, k]                                        # (C, M)
        pk = jnp.dot(w_ref[...], xk, preferred_element_type=jnp.float32)
        acc = pk if acc is None else jnp.maximum(acc, pk)
    # Bake in the ones row that folds the softmax row-sum into the downstream
    # g_aug @ p matmul (padded weight rows are zero, so max stays zero there).
    rows = jax.lax.broadcasted_iota(jnp.int32, acc.shape, 0)
    acc = jnp.where(rows == ones_row, 1.0, acc)
    pg_ref[0] = acc.astype(pg_ref.dtype)


def _attention_kernel(r_phi, r_g, gamma_ref, wt_ref, wo_ref, x_ref, pg_ref, o_ref):
    # gamma_ref: SMEM (1,) f32
    # wt_ref: (R_PHI, C) zero-padded theta weights
    # wo_ref: (C, R_G)   zero-padded output-conv weights
    # x_ref:  (1, C, TN) current batch / N-tile
    # pg_ref: (1, R_TOT, M) pooled [phi | g | ones] slab for this batch
    x = x_ref[0]                                                   # (C, TN)
    dt = x.dtype

    # theta projection (1x1 conv): (R_PHI, TN), f32 MXU accumulation
    theta = jnp.dot(wt_ref[...], x, preferred_element_type=jnp.float32)
    theta = theta.astype(dt)

    pg = pg_ref[0]                                                 # (R_TOT, M)
    phi = pg[0:r_phi]                                              # (R_PHI, M)
    g_aug = pg[r_phi:]                                             # (R_GAUG, M)

    # logits^T = phi^T @ theta -> (M, TN); contracting dim 0 of both keeps the
    # MXU in transposed-LHS mode (no materialized transpose). Padded rows of
    # phi/theta are zero, so they contribute nothing.
    s_t = jax.lax.dot_general(phi, theta, (((0,), (0,)), ((), ())),
                              preferred_element_type=jnp.float32)

    # Numerically-stable UNNORMALIZED softmax numerator; normalization is
    # deferred (the row-sum comes out of the MXU via the ones row below).
    s_max = jnp.max(s_t, axis=0, keepdims=True)                    # (1, TN)
    exp_dt = dt if dt == jnp.bfloat16 else jnp.float32             # bf16 EUP on v6e/v7x
    p_t = jnp.exp((s_t - s_max).astype(exp_dt)).astype(dt)         # (M, TN)

    # [g; 0; 1; 0] @ p -> canonical MXU matmul: rows [0:R_G) are the
    # unnormalized o_mid (zero in the padded rows), row R_G is the row sum l.
    o_aug = jax.lax.dot_general(g_aug, p_t, (((1,), (0,)), ((), ())),
                                preferred_element_type=jnp.float32)  # (R_GAUG, TN)
    o_mid = o_aug[0:r_g]                                           # (R_G, TN)
    l = o_aug[r_g:r_g + 1]                                         # (1, TN)

    # Deferred normalization fused with gamma: EUP reciprocal seed + one
    # Newton step -> O(TN) work instead of a (TN, M) divide.
    r = pl.reciprocal(l, approx=True)
    r = r * (2.0 - l * r)
    scale = gamma_ref[0] * r                                       # (1, TN)
    o_mid = (o_mid * scale).astype(dt)

    # output 1x1 conv (padded wo columns are zero) + residual
    o = jnp.dot(wo_ref[...], o_mid, preferred_element_type=jnp.float32)  # (C, TN)
    o_ref[0] = (o + x.astype(jnp.float32)).astype(o_ref.dtype)


def attention_forward(x, w_theta, w_phi, w_g, w_o, gamma):
    """x: (B, C, H, W); w_theta/w_phi: (C//8, C); w_g: (C//2, C);
    w_o: (C, C//2); gamma: (1,) f32 scalar."""
    B, C, H, W = x.shape
    assert C % 8 == 0, "ch must be divisible by 8 (ch//8 projection)"
    assert H % 2 == 0 and W % 2 == 0, "2x2 max-pool needs even H, W"
    C8, C2 = C // 8, C // 2
    N = H * W
    M = (H // 2) * (W // 2)

    dt = x.dtype
    itemsize = int(jnp.dtype(dt).itemsize)
    gamma = gamma.astype(jnp.float32)
    # TODO(synk): feed bf16 activations/weights from the caller when the model
    # tolerates it (MXU is bf16-native); the demo path stays f32 end-to-end.

    # Padded, sublane-aligned row counts (zero rows/cols keep math exact).
    R_PHI = _round_up(C8, 8)          # theta/phi rows
    R_G = _round_up(C2, 8)            # g / o_mid rows
    R_GAUG = R_G + 8                  # g rows + ones row + pad
    R_TOT = R_PHI + R_GAUG            # pooled slab height
    ONES_ROW = R_PHI + R_G            # absolute row of the ones row in the slab

    wt_pad = jnp.zeros((R_PHI, C), dt).at[:C8].set(w_theta.astype(dt))
    wo_pad = jnp.zeros((C, R_G), dt).at[:, :C2].set(w_o.astype(dt))
    w_pg = jnp.zeros((R_TOT, C), dt)
    w_pg = w_pg.at[:C8].set(w_phi.astype(dt))
    w_pg = w_pg.at[R_PHI:R_PHI + C2].set(w_g.astype(dt))

    x_flat = x.reshape(B, C, N)
    # (B, 4, C, M): axis 1 enumerates the 2x2 pooling-window offsets so that
    # conv1x1 + max-pool fuse into 4 matmuls + elementwise max (layout only).
    # TODO(synk): if the layer is HBM-bound on v5e, fuse this window transpose
    # with the upstream producer to avoid the extra pass over x.
    x_win = (x.reshape(B, C, H // 2, 2, W // 2, 2)
              .transpose(0, 3, 5, 1, 2, 4)
              .reshape(B, 4, C, M))

    budget = _vmem_budget_bytes()

    # ---- pass 1: pooled phi/g projections, once per batch -----------------
    pooled_flops = 2 * B * 4 * R_TOT * C * M
    pooled_bytes = (B * 4 * C * M + R_TOT * C + B * R_TOT * M) * itemsize
    pg = pl.pallas_call(
        partial(_pooled_proj_kernel, ONES_ROW),
        out_shape=jax.ShapeDtypeStruct((B, R_TOT, M), dt),
        grid_spec=pltpu.PrefetchScalarGridSpec(
            num_scalar_prefetch=0,
            grid=(B,),
            in_specs=[
                pl.BlockSpec((R_TOT, C), lambda b: (0, 0)),           # [w_phi;w_g]
                pl.BlockSpec((1, 4, C, M), lambda b: (b, 0, 0, 0)),   # x windows
            ],
            out_specs=pl.BlockSpec((1, R_TOT, M), lambda b: (b, 0, 0)),
        ),
        compiler_params=pltpu.CompilerParams(
            dimension_semantics=("parallel",),
            vmem_limit_bytes=budget),
        cost_estimate=pl.CostEstimate(
            flops=int(pooled_flops), transcendentals=0,
            bytes_accessed=int(pooled_bytes)),
    )(w_pg, x_win)

    # ---- pass 2: attention over lane-dense N tiles -------------------------
    tn = _pick_tn(N, M, C, C8, C2, R_TOT, itemsize, budget)
    nt = N // tn

    flops = 2 * B * (R_PHI * C * N          # theta conv
                     + N * R_PHI * M        # logits
                     + R_GAUG * M * N       # [g;1] @ p (o_mid + row sums)
                     + C * R_G * N)         # output conv
    bytes_accessed = (2 * B * C * N + B * R_TOT * M
                      + R_PHI * C + C * R_G) * itemsize

    out = pl.pallas_call(
        partial(_attention_kernel, R_PHI, R_G),
        out_shape=jax.ShapeDtypeStruct((B, C, N), dt),
        grid_spec=pltpu.PrefetchScalarGridSpec(
            num_scalar_prefetch=0,
            grid=(B, nt),
            in_specs=[
                pl.BlockSpec(memory_space=pltpu.MemorySpace.SMEM),      # gamma
                pl.BlockSpec((R_PHI, C), lambda b, n: (0, 0)),          # w_theta (padded)
                pl.BlockSpec((C, R_G), lambda b, n: (0, 0)),            # w_o (padded)
                pl.BlockSpec((1, C, tn), lambda b, n: (b, 0, n)),       # x tile
                pl.BlockSpec((1, R_TOT, M), lambda b, n: (b, 0, 0)),    # pooled slab
            ],
            out_specs=pl.BlockSpec((1, C, tn), lambda b, n: (b, 0, n)),
        ),
        compiler_params=pltpu.CompilerParams(
            dimension_semantics=("parallel", "parallel"),
            vmem_limit_bytes=budget),
        cost_estimate=pl.CostEstimate(
            flops=int(flops),
            transcendentals=int(B * N * M),
            bytes_accessed=int(bytes_accessed)),
    )(gamma, wt_pad, wo_pad, x_flat, pg)

    return out.reshape(B, C, H, W)


def init_params(key, ch):
    """Deterministic init mirroring the PyTorch module: four bias-free 1x1
    convs (PyTorch Conv2d default uniform scale) and gamma = 0.0."""
    assert ch % 8 == 0
    c8, c2 = ch // 8, ch // 2
    ks = jax.random.split(key, 4)

    def conv_w(k, out_c, in_c):
        bound = 1.0 / math.sqrt(in_c)
        return jax.random.uniform(k, (out_c, in_c), jnp.float32, -bound, bound)

    w_theta = conv_w(ks[0], c8, ch)
    w_phi = conv_w(ks[1], c8, ch)
    w_g = conv_w(ks[2], c2, ch)
    w_o = conv_w(ks[3], ch, c2)
    gamma = jnp.zeros((1,), jnp.float32)
    return w_theta, w_phi, w_g, w_o, gamma


def _reference(x, w_theta, w_phi, w_g, w_o, gamma):
    B, C, H, W = x.shape
    N, M = H * W, (H // 2) * (W // 2)
    xf = x.reshape(B, C, N).astype(jnp.float32)

    theta = jnp.einsum("oc,bcn->bon", w_theta.astype(jnp.float32), xf)
    phi_full = jnp.einsum("oc,bcn->bon", w_phi.astype(jnp.float32), xf)
    g_full = jnp.einsum("oc,bcn->bon", w_g.astype(jnp.float32), xf)

    def pool(t):
        c = t.shape[1]
        return (t.reshape(B, c, H // 2, 2, W // 2, 2)
                 .max(axis=(3, 5))
                 .reshape(B, c, M))

    phi = pool(phi_full)
    g = pool(g_full)

    s = jnp.einsum("bcn,bcm->bnm", theta, phi)          # theta^T @ phi
    beta = jax.nn.softmax(s, axis=-1)
    o_mid = jnp.einsum("bcm,bnm->bcn", g, beta)         # g @ beta^T
    o = jnp.einsum("oc,bcn->bon", w_o.astype(jnp.float32), o_mid)
    out = gamma[0] * o + xf
    return out.reshape(B, C, H, W).astype(x.dtype)


if __name__ == "__main__":
    key = jax.random.PRNGKey(0)
    k_params, k_x = jax.random.split(key)

    # ch must be divisible by 8 (module uses ch//8 projections); H, W even.
    B, C, H, W = 2, 64, 16, 16
    w_theta, w_phi, w_g, w_o, gamma0 = init_params(k_params, C)
    x = jax.random.normal(k_x, (B, C, H, W), dtype=jnp.float32)

    # module init (gamma = 0): output must equal the residual input
    out0 = jax.block_until_ready(
        attention_forward(x, w_theta, w_phi, w_g, w_o, gamma0))
    assert out0.shape == (B, C, H, W)
    assert jnp.allclose(out0, x, atol=1e-5, rtol=1e-5), "gamma=0 residual mismatch"

    # nonzero gamma exercises the full attention path
    gamma = jnp.array([0.8], dtype=jnp.float32)
    out = jax.block_until_ready(
        attention_forward(x, w_theta, w_phi, w_g, w_o, gamma))
    ref = _reference(x, w_theta, w_phi, w_g, w_o, gamma)
    assert jnp.allclose(out, ref, atol=2e-4, rtol=2e-4), "mismatch vs reference"

    print("KERNEL_OK")
</pallas_src>

<mosaic_0001>
module attributes {stable_mosaic.version = 11 : i64} {
  func.func @_pooled_proj_kernel(%arg0: i32, %arg1: memref<48x64xf32, #tpu.memory_space<vmem>>, %arg2: memref<1x4x64x64xf32, #tpu.memory_space<vmem>>, %arg3: memref<1x48x64xf32, #tpu.memory_space<vmem>>) attributes {dimension_semantics = [#tpu.dimension_semantics<parallel>], iteration_bounds = array<i64: 2>, scalar_prefetch = 0 : i64, scratch_operands = 0 : i64, tpu.core_type = #tpu.core_type<tc>, window_params = [{pipeline_mode = #tpu.pipeline_mode<synchronous>, transform_indices = @transform_0, window_bounds = array<i64: 48, 64>}, {transform_indices = @transform_1, window_bounds = array<i64: 1, 4, 64, 64>}, {transform_indices = @transform_2, window_bounds = array<i64: 1, 48, 64>}]} {
    %c0 = arith.constant 0 : index
    %c0_0 = arith.constant 0 : index
    %c0_1 = arith.constant 0 : index
    %c0_2 = arith.constant 0 : index
    %0 = vector.load %arg2[%c0, %c0_0, %c0_1, %c0_2] : memref<1x4x64x64xf32, #tpu.memory_space<vmem>>, vector<1x1x64x64xf32>
    %1 = vector.shape_cast %0 : vector<1x1x64x64xf32> to vector<64x64xf32>
    %c0_3 = arith.constant 0 : index
    %c0_4 = arith.constant 0 : index
    %2 = vector.load %arg1[%c0_3, %c0_4] : memref<48x64xf32, #tpu.memory_space<vmem>>, vector<48x64xf32>
    %cst = arith.constant dense<0.000000e+00> : vector<48x64xf32>
    %3 = tpu.matmul %2, %1, %cst {dimension_numbers = #tpu.dot_dimension_numbers<[1], [0], [0], [1], [0, 0, 1, 1], [], []>} : vector<48x64xf32>, vector<64x64xf32>, vector<48x64xf32> -> vector<48x64xf32>
    %c0_5 = arith.constant 0 : index
    %c1 = arith.constant 1 : index
    %c0_6 = arith.constant 0 : index
    %c0_7 = arith.constant 0 : index
    %4 = vector.load %arg2[%c0_5, %c1, %c0_6, %c0_7] : memref<1x4x64x64xf32, #tpu.memory_space<vmem>>, vector<1x1x64x64xf32>
    %5 = vector.shape_cast %4 : vector<1x1x64x64xf32> to vector<64x64xf32>
    %c0_8 = arith.constant 0 : index
    %c0_9 = arith.constant 0 : index
    %6 = vector.load %arg1[%c0_8, %c0_9] : memref<48x64xf32, #tpu.memory_space<vmem>>, vector<48x64xf32>
    %cst_10 = arith.constant dense<0.000000e+00> : vector<48x64xf32>
    %7 = tpu.matmul %6, %5, %cst_10 {dimension_numbers = #tpu.dot_dimension_numbers<[1], [0], [0], [1], [0, 0, 1, 1], [], []>} : vector<48x64xf32>, vector<64x64xf32>, vector<48x64xf32> -> vector<48x64xf32>
    %8 = arith.maximumf %3, %7 : vector<48x64xf32>
    %c0_11 = arith.constant 0 : index
    %c2 = arith.constant 2 : index
    %c0_12 = arith.constant 0 : index
    %c0_13 = arith.constant 0 : index
    %9 = vector.load %arg2[%c0_11, %c2, %c0_12, %c0_13] : memref<1x4x64x64xf32, #tpu.memory_space<vmem>>, vector<1x1x64x64xf32>
    %10 = vector.shape_cast %9 : vector<1x1x64x64xf32> to vector<64x64xf32>
    %c0_14 = arith.constant 0 : index
    %c0_15 = arith.constant 0 : index
    %11 = vector.load %arg1[%c0_14, %c0_15] : memref<48x64xf32, #tpu.memory_space<vmem>>, vector<48x64xf32>
    %cst_16 = arith.constant dense<0.000000e+00> : vector<48x64xf32>
    %12 = tpu.matmul %11, %10, %cst_16 {dimension_numbers = #tpu.dot_dimension_numbers<[1], [0], [0], [1], [0, 0, 1, 1], [], []>} : vector<48x64xf32>, vector<64x64xf32>, vector<48x64xf32> -> vector<48x64xf32>
    %13 = arith.maximumf %8, %12 : vector<48x64xf32>
    %c0_17 = arith.constant 0 : index
    %c3 = arith.constant 3 : index
    %c0_18 = arith.constant 0 : index
    %c0_19 = arith.constant 0 : index
    %14 = vector.load %arg2[%c0_17, %c3, %c0_18, %c0_19] : memref<1x4x64x64xf32, #tpu.memory_space<vmem>>, vector<1x1x64x64xf32>
    %15 = vector.shape_cast %14 : vector<1x1x64x64xf32> to vector<64x64xf32>
    %c0_20 = arith.constant 0 : index
    %c0_21 = arith.constant 0 : index
    %16 = vector.load %arg1[%c0_20, %c0_21] : memref<48x64xf32, #tpu.memory_space<vmem>>, vector<48x64xf32>
    %cst_22 = arith.constant dense<0.000000e+00> : vector<48x64xf32>
    %17 = tpu.matmul %16, %15, %cst_22 {dimension_numbers = #tpu.dot_dimension_numbers<[1], [0], [0], [1], [0, 0, 1, 1], [], []>} : vector<48x64xf32>, vector<64x64xf32>, vector<48x64xf32> -> vector<48x64xf32>
    %18 = arith.maximumf %13, %17 : vector<48x64xf32>
    %19 = tpu.iota {dimensions = array<i32: 0>} : vector<48x64xi32>
    %c40_i32 = arith.constant 40 : i32
    %20 = vector.broadcast %c40_i32 : i32 to vector<48x64xi32>
    %21 = arith.cmpi eq, %19, %20 : vector<48x64xi32>
    %cst_23 = arith.constant 1.000000e+00 : f32
    %22 = vector.broadcast %cst_23 : f32 to vector<48x64xf32>
    %23 = arith.select %21, %22, %18 : vector<48x64xi1>, vector<48x64xf32>
    %c0_24 = arith.constant 0 : index
    %c0_25 = arith.constant 0 : index
    %c0_26 = arith.constant 0 : index
    %24 = vector.load %arg3[%c0_24, %c0_25, %c0_26] : memref<1x48x64xf32, #tpu.memory_space<vmem>>, vector<1x48x64xf32>
    %25 = vector.shape_cast %24 : vector<1x48x64xf32> to vector<48x64xf32>
    %26 = vector.shape_cast %23 : vector<48x64xf32> to vector<1x48x64xf32>
    tpu.vector_store %arg3[%c0_24, %c0_25, %c0_26], %26 {strides = array<i32>} : memref<1x48x64xf32, #tpu.memory_space<vmem>>, vector<1x48x64xf32>,
    return
  }
  func.func @transform_0(%arg0: i32) -> (i32, i32) {
    %c0_i32 = arith.constant 0 : i32
    %c0_i32_0 = arith.constant 0 : i32
    %c0_i32_1 = arith.constant 0 : i32
    return %c0_i32, %c0_i32_0 : i32, i32
  }
  func.func @transform_1(%arg0: i32) -> (i32, i32, i32, i32) {
    %c0_i32 = arith.constant 0 : i32
    %c0_i32_0 = arith.constant 0 : i32
    %c0_i32_1 = arith.constant 0 : i32
    %c0_i32_2 = arith.constant 0 : i32
    return %arg0, %c0_i32, %c0_i32_0, %c0_i32_1 : i32, i32, i32, i32
  }
  func.func @transform_2(%arg0: i32) -> (i32, i32, i32) {
    %c0_i32 = arith.constant 0 : i32
    %c0_i32_0 = arith.constant 0 : i32
    %c0_i32_1 = arith.constant 0 : i32
    return %arg0, %c0_i32, %c0_i32_0 : i32, i32, i32
  }
}

</mosaic_0001>

<llo_original>
// kernel: tpu_custom_call.1
$region0: #{tpu_custom_call.1}
  #allocation0 [shape = 'u32[]', space=smem, size = 0x4, offset = 0x4, fixed_abs, tag = 'smem constant byte address 0x4 - core index']
  #allocation1 [shape = 'u32[144,128]{1,0:T(1,128)}', space=vmem, size = 0x12000, scoped, tag = 'internal scratch']
  %s0 = inlined_call_operand.hbm [shape: f32[48,64], index: 0, kind: input, shape index: {}]
  %s1 = inlined_call_operand.hbm [shape: f32[2,4,64,64], index: 1, kind: input, shape index: {}]
  %s2 = inlined_call_operand.hbm [shape: f32[2,48,64], index: 2, kind: output, shape index: {}]
  %s3 = sld [smem:[#allocation0]]
  $region49: #{tpu_custom_call.1} parent=0
    _
  %s5 = ssub.s32 1, %s3
  %s6 = scalar_select 0, %s5, %s3
  $region1: #{tpu_custom_call.1} parent=0
    #allocation2 [shape = 'u8[24576]{0}', space=vmem, size = 0x6000, scoped, tag = 'input window, operand 0, single buffered']
    #allocation3 [shape = 's32[2]{0}', space=sflag, size = 0x8, scoped, tag = 'scoped memory for tpu_custom_call.1']
    #allocation4 [shape = 's32[2]{0}', space=sflag, size = 0x8, scoped, tag = 'scoped memory for tpu_custom_call.1']
    #allocation5 [shape = 'u8[262144]{0}', space=vmem, size = 0x40000, scoped, tag = 'input window, operand 1']
    #allocation6 [shape = 's32[2]{0}', space=sflag, size = 0x8, scoped, tag = 'scoped memory for tpu_custom_call.1']
    #allocation7 [shape = 'u8[49152]{0}', space=vmem, size = 0xc000, scoped, tag = 'output window, operand 0']
    %7 = vsyncpa [#allocation3], 0
    %8 = vsyncpa [#allocation6], 0
    %s9 = scalar_lea.sflag [#allocation6], 1
    %10 = vsyncpa %s9, 0
    %11 = vsyncpa [#allocation4], 0
    %s12 = scalar_lea.sflag [#allocation4], 1
    %13 = vsyncpa %s12, 0
    loop: start=0, step=1, limit=4
    $region2: #{tpu_custom_call.1} parent=1 // loop_pre_header
      _
    $region3: #{tpu_custom_call.1} parent=1 // loop_header
      %s15 = sphi 0, %s19
      %p16 = scmp.ge.s32.totalorder %s15, 4
      %s23 = sphi 0, %s23
      %s25 = sphi 0, %s23
      %s26 = sphi 0, %s25
      %s40 = sphi 0, %s26
      %s46 = sphi 0, %s48
      %s49 = sphi 0, %s46
      %s50 = sphi 0, %s49
      %s66 = sphi 0, %s50
      %s72 = sphi 0, %s74
      %s75 = sphi 0, %s72
      %s76 = sphi 0, %s75
      %s92 = sphi 0, %s76
    $region4: #{tpu_custom_call.1} parent=1 // loop_header_branch
      %18 = sbr.rel (%p16) target = $region8
    $region5: #{tpu_custom_call.1} parent=1 // loop_body
      %s20 = ssub.s32 %s15, 1
      %s21 = ssub.s32 %s15, 2
      %s22 = sadd.s32 %s15, 1
      %s24 = sadd.s32 %s23, 1
      %p27 = scmp.eq.s32.totalorder %s15, 1
      %p28 = scmp.ne.s32.totalorder %s23, %s25
      %p29 = scmp.eq.s32.totalorder %s15, 0
      %p30 = por %p28, %p29
      %p31 = scmp.ne.s32.totalorder %s23, %s25
      %p32 = scmp.eq.s32.totalorder %s20, 1
      %p33 = por %p31, %p32
      %p34 = scmp.ne.s32.totalorder %s25, %s26
      %p35 = scmp.eq.s32.totalorder %s20, 0
      %p36 = por %p34, %p35
      %p37 = scmp.ne.s32.totalorder %s25, %s26
      %p38 = scmp.eq.s32.totalorder %s21, 1
      %p39 = por %p37, %p38
      %p41 = scmp.ne.s32.totalorder %s26, %s40
      %p42 = scmp.eq.s32.totalorder %s21, 0
      %p43 = por %p41, %p42
      %s44 = ssub.s32 %s15, %s22
      %p45 = scmp.eq.s32.totalorder %s44, 0
      %s47 = sadd.s32 %s46, 1
      %s48 = scalar_select %p45, %s46, %s47
      %p51 = pneg %p45
      %p52 = scmp.eq.s32.totalorder %s15, 1
      %p53 = por %p51, %p52
      %p54 = scmp.ne.s32.totalorder %s46, %s49
      %p55 = scmp.eq.s32.totalorder %s15, 0
      %p56 = por %p54, %p55
      %p57 = scmp.ne.s32.totalorder %s46, %s49
      %p58 = scmp.eq.s32.totalorder %s20, 1
      %p59 = por %p57, %p58
      %p60 = scmp.ne.s32.totalorder %s49, %s50
      %p61 = scmp.eq.s32.totalorder %s20, 0
      %p62 = por %p60, %p61
      %p63 = scmp.ne.s32.totalorder %s49, %s50
      %p64 = scmp.eq.s32.totalorder %s21, 1
      %p65 = por %p63, %p64
      %p67 = scmp.ne.s32.totalorder %s50, %s66
      %p68 = scmp.eq.s32.totalorder %s21, 0
      %p69 = por %p67, %p68
      %s70 = ssub.s32 %s15, %s22
      %p71 = scmp.eq.s32.totalorder %s70, 0
      %s73 = sadd.s32 %s72, 1
      %s74 = scalar_select %p71, %s72, %s73
      %p77 = pneg %p71
      %p78 = scmp.eq.s32.totalorder %s15, 1
      %p79 = por %p77, %p78
      %p80 = scmp.ne.s32.totalorder %s72, %s75
      %p81 = scmp.eq.s32.totalorder %s15, 0
      %p82 = por %p80, %p81
      %p83 = scmp.ne.s32.totalorder %s72, %s75
      %p84 = scmp.eq.s32.totalorder %s20, 1
      %p85 = por %p83, %p84
      %p86 = scmp.ne.s32.totalorder %s75, %s76
      %p87 = scmp.eq.s32.totalorder %s20, 0
      %p88 = por %p86, %p87
      %p89 = scmp.ne.s32.totalorder %s75, %s76
      %p90 = scmp.eq.s32.totalorder %s21, 1
      %p91 = por %p89, %p90
      %p93 = scmp.ne.s32.totalorder %s76, %s92
      %p94 = scmp.eq.s32.totalorder %s21, 0
      %p95 = por %p93, %p94
      %p96 = scmp.le.s32.totalorder 1, %s15
      %p97 = scmp.lt.s32.totalorder %s15, 3
      %p98 = pnand %p96, %p97
      %p99 = pneg %p98
      // Predicated region
      $region9: #{tpu_custom_call.1} parent=5 // pred_check
        _
      $region10: #{tpu_custom_call.1} parent=5 // pred_check_branch
        %101 = sbr.rel (%p98) target = $region12
      $region11: #{tpu_custom_call.1} parent=5 // pred_region
        %s102 = ssub.s32 %s15, 1
        // Predicated region
        $region13: #{tpu_custom_call.1} parent=11 // pred_check
          %p103 = pneg %p36
        $region14: #{tpu_custom_call.1} parent=11 // pred_check_branch
          %105 = sbr.rel (%p103) target = $region16
        $region15: #{tpu_custom_call.1} parent=11 // pred_region
          %s107 = ssub.s32 768, 768
          %108 = vsyncadd [#allocation3], %s107
          %s109 = sshll.u32 [#allocation2], 4
          %s110 = int_to_ptr.vmem [resolvable:$true] %s109
          %115 = dma.hbm_to_vmem [thread:$0]  %s0, 768, %s110, [#allocation3], 128, 128, 8
        $region16: #{tpu_custom_call.1} parent=11 // pred_fallthru
          _
      $region12: #{tpu_custom_call.1} parent=5 // pred_fallthru
        _
      %p116 = scmp.lt.s32.totalorder %s15, 2
      // Predicated region
      $region17: #{tpu_custom_call.1} parent=5 // pred_check
        %p117 = pneg %p116
      $region18: #{tpu_custom_call.1} parent=5 // pred_check_branch
        %119 = sbr.rel (%p117) target = $region20
      $region19: #{tpu_custom_call.1} parent=5 // pred_region
        // Predicated region
        $region21: #{tpu_custom_call.1} parent=19 // pred_check
          %p120 = pneg %p56
        $region22: #{tpu_custom_call.1} parent=19 // pred_check_branch
          %122 = sbr.rel (%p120) target = $region24
        $region23: #{tpu_custom_call.1} parent=19 // pred_region
          %s123 = sand.u32 %s46, 1
          %s124 = scalar_lea.sflag [#allocation6], %s123
          %s125 = sand.u32 %s46, 1
          %s126 = smul.addr %s125, 256
          %s127 = scalar_lea.vmem [#allocation5], %s126
          %s129 = ssub.s32 4096, 4096
          %130 = vsyncadd %s124, %s129
          %s131 = smul.addr %s15, 32
          %s132 = smul.addr %s131, 128
          %s133 = scalar_lea.hbm %s1, %s132
          %s134 = sshll.u32 %s127, 4
          %s135 = int_to_ptr.vmem [resolvable:$true] %s134
          %140 = dma.hbm_to_vmem [thread:$0]  %s133, 4096, %s135, %s124, 128, 128, 8
        $region24: #{tpu_custom_call.1} parent=19 // pred_fallthru
          _
      $region20: #{tpu_custom_call.1} parent=5 // pred_fallthru
        _
      %p141 = scmp.le.s32.totalorder 1, %s15
      %p142 = scmp.lt.s32.totalorder %s15, 3
      %p143 = pnand %p141, %p142
      %p144 = pneg %p143
      // Predicated region
      $region25: #{tpu_custom_call.1} parent=5 // pred_check
        _
      $region26: #{tpu_custom_call.1} parent=5 // pred_check_branch
        %146 = sbr.rel (%p143) target = $region28
      $region27: #{tpu_custom_call.1} parent=5 // pred_region
        %s147 = ssub.s32 %s15, 1
        // Predicated region
        $region29: #{tpu_custom_call.1} parent=27 // pred_check
          %p148 = pneg %p36
        $region30: #{tpu_custom_call.1} parent=27 // pred_check_branch
          %150 = sbr.rel (%p148) target = $region32
        $region31: #{tpu_custom_call.1} parent=27 // pred_region
          %151 = dma.done [#allocation3], 768
        $region32: #{tpu_custom_call.1} parent=27 // pred_fallthru
          _
        %s152 = sand.u32 %s49, 1
        %s153 = scalar_lea.sflag [#allocation6], %s152
        %s154 = sand.u32 %s49, 1
        %s155 = smul.addr %s154, 256
        %s156 = scalar_lea.vmem [#allocation5], %s155
        // Predicated region
        $region33: #{tpu_custom_call.1} parent=27 // pred_check
          %p157 = pneg %p62
        $region34: #{tpu_custom_call.1} parent=27 // pred_check_branch
          %159 = sbr.rel (%p157) target = $region36
        $region35: #{tpu_custom_call.1} parent=27 // pred_region
          %160 = dma.done %s153, 4096
        $region36: #{tpu_custom_call.1} parent=27 // pred_fallthru
          _
        %p161 = pneg %p36
        %p162 = pneg %p33
        %s163 = sand.u32 %s49, 1
        %s164 = scalar_lea.sflag [#allocation6], %s163
        %s165 = sand.u32 %s49, 1
        %s166 = smul.addr %s165, 256
        %s167 = scalar_lea.vmem [#allocation5], %s166
        %p168 = pneg %p62
        %p169 = pneg %p59
        %p170 = pneg %p88
        %p171 = pneg %p85
        %s172 = sand.u32 %s75, 1
        %s173 = scalar_lea.sflag [#allocation4], %s172
        %s174 = sand.u32 %s75, 1
        %s175 = smul.addr %s174, 48
        %s176 = scalar_lea.vmem [#allocation7], %s175
        %v177 = vld [vmem:[%s156] sm:$0xff]
        %v178 = vld [vmem:[%s156 + $0x8] sm:$0xff]
        %v179 = vld [vmem:[%s156 + $0x10] sm:$0xff]
        %v180 = vld [vmem:[%s156 + $0x18] sm:$0xff]
        %v181 = vld [vmem:[%s156 + $0x20] sm:$0xff]
        %v182 = vld [vmem:[%s156 + $0x28] sm:$0xff]
        %v183 = vld [vmem:[%s156 + $0x30] sm:$0xff]
        %v184 = vld [vmem:[%s156 + $0x38] sm:$0xff]
        %v185 = vld [vmem:[#allocation2] sm:$0xff]
        %v186 = vld [vmem:[#allocation2 + $0x8] sm:$0xff]
        %v187 = vld [vmem:[#allocation2 + $0x10] sm:$0xff]
        %v188 = vld [vmem:[#allocation2 + $0x18] sm:$0xff]
        %v189 = vld [vmem:[#allocation2 + $0x20] sm:$0xff]
        %v190 = vld [vmem:[#allocation2 + $0x28] sm:$0xff]
        %vm191 = vcmask 523264
        %v193 = vsel %vm191, %v185, 0
        %v196 = vsel %vm191, %v186, 0
        %v199 = vsel %vm191, %v187, 0
        %v202 = vsel %vm191, %v188, 0
        %v205 = vsel %vm191, %v189, 0
        %v208 = vsel %vm191, %v190, 0
        %210 = vmatprep.subr.mxu0 0.0
        %211 = vmatpush1.msra.mxu0 %v177
        %212 = vmatprep.subr.mxu0 0.0
        %213 = vmatpush1.msra.mxu0 %v178
        %214 = vmatprep.subr.mxu0 0.0
        %215 = vmatpush1.msra.mxu0 %v179
        %216 = vmatprep.subr.mxu0 0.0
        %217 = vmatpush1.msra.mxu0 %v180
        %218 = vmatprep.subr.mxu0 0.0
        %219 = vmatpush1.msra.mxu0 %v181
        %220 = vmatprep.subr.mxu0 0.0
        %221 = vmatpush1.msra.mxu0 %v182
        %222 = vmatprep.subr.mxu0 0.0
        %223 = vmatpush1.msra.mxu0 %v183
        %224 = vmatprep.subr.mxu0 0.0
        %225 = vmatpush1.msra.mxu0 %v184
        %226 = vmatprep.subr.mxu0 0.0
        %227 = vmatpush1.msra.mxu0 0.0
        %228 = vmatprep.subr.mxu0 0.0
        %229 = vmatpush1.msra.mxu0 0.0
        %230 = vmatprep.subr.mxu0 0.0
        %231 = vmatpush1.msra.mxu0 0.0
        %232 = vmatprep.subr.mxu0 0.0
        %233 = vmatpush1.msra.mxu0 0.0
        %234 = vmatprep.subr.mxu0 0.0
        %235 = vmatpush1.msra.mxu0 0.0
        %236 = vmatprep.subr.mxu0 0.0
        %237 = vmatpush1.msra.mxu0 0.0
        %238 = vmatprep.subr.mxu0 0.0
        %239 = vmatpush1.msra.mxu0 0.0
        %240 = vmatprep.subr.mxu0 0.0
        %241 = vmatpush1.msra.mxu0 0.0
        %242 = vmatprep.subr.mxu0 0.0
        %243 = vmatpush1.msra.mxu0 0.0
        %244 = vmatprep.subr.mxu0 0.0
        %245 = vmatpush1.msra.mxu0 0.0
        %246 = vmatprep.subr.mxu0 0.0
        %247 = vmatpush1.msra.mxu0 0.0
        %248 = vmatprep.subr.mxu0 0.0
        %249 = vmatpush1.msra.mxu0 0.0
        %250 = vmatprep.subr.mxu0 0.0
        %251 = vmatpush1.msra.mxu0 0.0
        %252 = vmatprep.subr.mxu0 0.0
        %253 = vmatpush1.msra.mxu0 0.0
        %254 = vmatprep.subr.mxu0 0.0
        %255 = vmatpush1.msra.mxu0 0.0
        %256 = vmatprep.subr.mxu0 0.0
        %257 = vmatpush1.msra.mxu0 0.0
        %258 = vmatprep.subr.mxu0 0.0
        %259 = vmatpush1.msra.mxu0 0.0
        %260 = vmatprep.subr.mxu0 0.0
        %261 = vmatpush1.msra.mxu0 0.0
        %262 = vmatprep.subr.mxu0 0.0
        %263 = vmatpush1.msra.mxu0 0.0
        %264 = vmatprep.subr.mxu0 0.0
        %265 = vmatpush1.msra.mxu0 0.0
        %266 = vmatprep.subr.mxu0 0.0
        %267 = vmatpush1.msra.mxu0 0.0
        %268 = vmatprep.subr.mxu0 0.0
        %269 = vmatpush1.msra.mxu0 0.0
        %270 = vmatprep.subr.mxu0 0.0
        %271 = vmatpush1.msra.mxu0 0.0
        %272 = vmatprep.subr.mxu0 0.0
        %273 = vmatpush1.msra.mxu0 0.0
        %274 = vmatprep.mubr.f32.mxu0 0.0
        %275 = vmatmul.mubr.f32.gmra.mrb[0].mxu0 %v193
        %v276 = vpop.f32.mrb[0].mxu0
        %v277 = vadd.f32 0.0, %v276
        %v278 = vpop.f32.mrb[0].mxu0
        %279 = vmatprep.mubr.f32.mxu0 0.0
        %280 = vmatmul.mubr.f32.gmra.mrb[0].mxu0 %v196
        %v281 = vpop.f32.mrb[0].mxu0
        %v282 = vadd.f32 0.0, %v281
        %v283 = vpop.f32.mrb[0].mxu0
        %284 = vmatprep.mubr.f32.mxu0 0.0
        %285 = vmatmul.mubr.f32.gmra.mrb[0].mxu0 %v199
        %v286 = vpop.f32.mrb[0].mxu0
        %v287 = vadd.f32 0.0, %v286
        %v288 = vpop.f32.mrb[0].mxu0
        %289 = vmatprep.mubr.f32.mxu0 0.0
        %290 = vmatmul.mubr.f32.gmra.mrb[0].mxu0 %v202
        %v291 = vpop.f32.mrb[0].mxu0
        %v292 = vadd.f32 0.0, %v291
        %v293 = vpop.f32.mrb[0].mxu0
        %294 = vmatprep.mubr.f32.mxu0 0.0
        %295 = vmatmul.mubr.f32.gmra.mrb[0].mxu0 %v205
        %v296 = vpop.f32.mrb[0].mxu0
        %v297 = vadd.f32 0.0, %v296
        %v298 = vpop.f32.mrb[0].mxu0
        %299 = vmatprep.mubr.f32.mxu0 0.0
        %300 = vmatmul.mubr.f32.gmra.mrb[0].mxu0 %v208
        %v301 = vpop.f32.mrb[0].mxu0
        %v302 = vadd.f32 0.0, %v301
        %v303 = vpop.f32.mrb[0].mxu0
        %304 = vdwg.mxu0
        %s305 = scalar_lea.vmem %s156, 64 [#allocation5]
        %v306 = vld [vmem:[%s305] sm:$0xff]
        %v307 = vld [vmem:[%s305 + $0x8] sm:$0xff]
        %v308 = vld [vmem:[%s305 + $0x10] sm:$0xff]
        %v309 = vld [vmem:[%s305 + $0x18] sm:$0xff]
        %v310 = vld [vmem:[%s305 + $0x20] sm:$0xff]
        %v311 = vld [vmem:[%s305 + $0x28] sm:$0xff]
        %v312 = vld [vmem:[%s305 + $0x30] sm:$0xff]
        %v313 = vld [vmem:[%s305 + $0x38] sm:$0xff]
        %314 = vmatprep.subr.mxu0 0.0
        %315 = vmatpush1.msra.mxu0 %v306
        %316 = vmatprep.subr.mxu0 0.0
        %317 = vmatpush1.msra.mxu0 %v307
        %318 = vmatprep.subr.mxu0 0.0
        %319 = vmatpush1.msra.mxu0 %v308
        %320 = vmatprep.subr.mxu0 0.0
        %321 = vmatpush1.msra.mxu0 %v309
        %322 = vmatprep.subr.mxu0 0.0
        %323 = vmatpush1.msra.mxu0 %v310
        %324 = vmatprep.subr.mxu0 0.0
        %325 = vmatpush1.msra.mxu0 %v311
        %326 = vmatprep.subr.mxu0 0.0
        %327 = vmatpush1.msra.mxu0 %v312
        %328 = vmatprep.subr.mxu0 0.0
        %329 = vmatpush1.msra.mxu0 %v313
        %330 = vmatprep.subr.mxu0 0.0
        %331 = vmatpush1.msra.mxu0 0.0
        %332 = vmatprep.subr.mxu0 0.0
        %333 = vmatpush1.msra.mxu0 0.0
        %334 = vmatprep.subr.mxu0 0.0
        %335 = vmatpush1.msra.mxu0 0.0
        %336 = vmatprep.subr.mxu0 0.0
        %337 = vmatpush1.msra.mxu0 0.0
        %338 = vmatprep.subr.mxu0 0.0
        %339 = vmatpush1.msra.mxu0 0.0
        %340 = vmatprep.subr.mxu0 0.0
        %341 = vmatpush1.msra.mxu0 0.0
        %342 = vmatprep.subr.mxu0 0.0
        %343 = vmatpush1.msra.mxu0 0.0
        %344 = vmatprep.subr.mxu0 0.0
        %345 = vmatpush1.msra.mxu0 0.0
        %346 = vmatprep.subr.mxu0 0.0
        %347 = vmatpush1.msra.mxu0 0.0
        %348 = vmatprep.subr.mxu0 0.0
        %349 = vmatpush1.msra.mxu0 0.0
        %350 = vmatprep.subr.mxu0 0.0
        %351 = vmatpush1.msra.mxu0 0.0
        %352 = vmatprep.subr.mxu0 0.0
        %353 = vmatpush1.msra.mxu0 0.0
        %354 = vmatprep.subr.mxu0 0.0
        %355 = vmatpush1.msra.mxu0 0.0
        %356 = vmatprep.subr.mxu0 0.0
        %357 = vmatpush1.msra.mxu0 0.0
        %358 = vmatprep.subr.mxu0 0.0
        %359 = vmatpush1.msra.mxu0 0.0
        %360 = vmatprep.subr.mxu0 0.0
        %361 = vmatpush1.msra.mxu0 0.0
        %362 = vmatprep.subr.mxu0 0.0
        %363 = vmatpush1.msra.mxu0 0.0
        %364 = vmatprep.subr.mxu0 0.0
        %365 = vmatpush1.msra.mxu0 0.0
        %366 = vmatprep.subr.mxu0 0.0
        %367 = vmatpush1.msra.mxu0 0.0
        %368 = vmatprep.subr.mxu0 0.0
        %369 = vmatpush1.msra.mxu0 0.0
        %370 = vmatprep.subr.mxu0 0.0
        %371 = vmatpush1.msra.mxu0 0.0
        %372 = vmatprep.subr.mxu0 0.0
        %373 = vmatpush1.msra.mxu0 0.0
        %374 = vmatprep.subr.mxu0 0.0
        %375 = vmatpush1.msra.mxu0 0.0
        %376 = vmatprep.subr.mxu0 0.0
        %377 = vmatpush1.msra.mxu0 0.0
        %378 = vmatprep.mubr.f32.mxu0 0.0
        %379 = vmatmul.mubr.f32.gmra.mrb[0].mxu0 %v193
        %v380 = vpop.f32.mrb[0].mxu0
        %v381 = vadd.f32 0.0, %v380
        %v382 = vpop.f32.mrb[0].mxu0
        %383 = vmatprep.mubr.f32.mxu0 0.0
        %384 = vmatmul.mubr.f32.gmra.mrb[0].mxu0 %v196
        %v385 = vpop.f32.mrb[0].mxu0
        %v386 = vadd.f32 0.0, %v385
        %v387 = vpop.f32.mrb[0].mxu0
        %388 = vmatprep.mubr.f32.mxu0 0.0
        %389 = vmatmul.mubr.f32.gmra.mrb[0].mxu0 %v199
        %v390 = vpop.f32.mrb[0].mxu0
        %v391 = vadd.f32 0.0, %v390
        %v392 = vpop.f32.mrb[0].mxu0
        %393 = vmatprep.mubr.f32.mxu0 0.0
        %394 = vmatmul.mubr.f32.gmra.mrb[0].mxu0 %v202
        %v395 = vpop.f32.mrb[0].mxu0
        %v396 = vadd.f32 0.0, %v395
        %v397 = vpop.f32.mrb[0].mxu0
        %398 = vmatprep.mubr.f32.mxu0 0.0
        %399 = vmatmul.mubr.f32.gmra.mrb[0].mxu0 %v205
        %v400 = vpop.f32.mrb[0].mxu0
        %v401 = vadd.f32 0.0, %v400
        %v402 = vpop.f32.mrb[0].mxu0
        %403 = vmatprep.mubr.f32.mxu0 0.0
        %404 = vmatmul.mubr.f32.gmra.mrb[0].mxu0 %v208
        %v405 = vpop.f32.mrb[0].mxu0
        %v406 = vadd.f32 0.0, %v405
        %v407 = vpop.f32.mrb[0].mxu0
        %408 = vdwg.mxu0
        %v409 = vmax.f32 %v277, %v381
        %v410 = vmax.f32 %v282, %v386
        %v411 = vmax.f32 %v287, %v391
        %v412 = vmax.f32 %v292, %v396
        %v413 = vmax.f32 %v297, %v401
        %v414 = vmax.f32 %v302, %v406
        %s415 = scalar_lea.vmem %s156, 128 [#allocation5]
        %v416 = vld [vmem:[%s415] sm:$0xff]
        %v417 = vld [vmem:[%s415 + $0x8] sm:$0xff]
        %v418 = vld [vmem:[%s415 + $0x10] sm:$0xff]
        %v419 = vld [vmem:[%s415 + $0x18] sm:$0xff]
        %v420 = vld [vmem:[%s415 + $0x20] sm:$0xff]
        %v421 = vld [vmem:[%s415 + $0x28] sm:$0xff]
        %v422 = vld [vmem:[%s415 + $0x30] sm:$0xff]
        %v423 = vld [vmem:[%s415 + $0x38] sm:$0xff]
        %424 = vmatprep.subr.mxu0 0.0
        %425 = vmatpush1.msra.mxu0 %v416
        %426 = vmatprep.subr.mxu0 0.0
        %427 = vmatpush1.msra.mxu0 %v417
        %428 = vmatprep.subr.mxu0 0.0
        %429 = vmatpush1.msra.mxu0 %v418
        %430 = vmatprep.subr.mxu0 0.0
        %431 = vmatpush1.msra.mxu0 %v419
        %432 = vmatprep.subr.mxu0 0.0
        %433 = vmatpush1.msra.mxu0 %v420
        %434 = vmatprep.subr.mxu0 0.0
        %435 = vmatpush1.msra.mxu0 %v421
        %436 = vmatprep.subr.mxu0 0.0
        %437 = vmatpush1.msra.mxu0 %v422
        %438 = vmatprep.subr.mxu0 0.0
        %439 = vmatpush1.msra.mxu0 %v423
        %440 = vmatprep.subr.mxu0 0.0
        %441 = vmatpush1.msra.mxu0 0.0
        %442 = vmatprep.subr.mxu0 0.0
        %443 = vmatpush1.msra.mxu0 0.0
        %444 = vmatprep.subr.mxu0 0.0
        %445 = vmatpush1.msra.mxu0 0.0
        %446 = vmatprep.subr.mxu0 0.0
        %447 = vmatpush1.msra.mxu0 0.0
        %448 = vmatprep.subr.mxu0 0.0
        %449 = vmatpush1.msra.mxu0 0.0
        %450 = vmatprep.subr.mxu0 0.0
        %451 = vmatpush1.msra.mxu0 0.0
        %452 = vmatprep.subr.mxu0 0.0
        %453 = vmatpush1.msra.mxu0 0.0
        %454 = vmatprep.subr.mxu0 0.0
        %455 = vmatpush1.msra.mxu0 0.0
        %456 = vmatprep.subr.mxu0 0.0
        %457 = vmatpush1.msra.mxu0 0.0
        %458 = vmatprep.subr.mxu0 0.0
        %459 = vmatpush1.msra.mxu0 0.0
        %460 = vmatprep.subr.mxu0 0.0
        %461 = vmatpush1.msra.mxu0 0.0
        %462 = vmatprep.subr.mxu0 0.0
        %463 = vmatpush1.msra.mxu0 0.0
        %464 = vmatprep.subr.mxu0 0.0
        %465 = vmatpush1.msra.mxu0 0.0
        %466 = vmatprep.subr.mxu0 0.0
        %467 = vmatpush1.msra.mxu0 0.0
        %468 = vmatprep.subr.mxu0 0.0
        %469 = vmatpush1.msra.mxu0 0.0
        %470 = vmatprep.subr.mxu0 0.0
        %471 = vmatpush1.msra.mxu0 0.0
        %472 = vmatprep.subr.mxu0 0.0
        %473 = vmatpush1.msra.mxu0 0.0
        %474 = vmatprep.subr.mxu0 0.0
        %475 = vmatpush1.msra.mxu0 0.0
        %476 = vmatprep.subr.mxu0 0.0
        %477 = vmatpush1.msra.mxu0 0.0
        %478 = vmatprep.subr.mxu0 0.0
        %479 = vmatpush1.msra.mxu0 0.0
        %480 = vmatprep.subr.mxu0 0.0
        %481 = vmatpush1.msra.mxu0 0.0
        %482 = vmatprep.subr.mxu0 0.0
        %483 = vmatpush1.msra.mxu0 0.0
        %484 = vmatprep.subr.mxu0 0.0
        %485 = vmatpush1.msra.mxu0 0.0
        %486 = vmatprep.subr.mxu0 0.0
        %487 = vmatpush1.msra.mxu0 0.0
        %488 = vmatprep.mubr.f32.mxu0 0.0
        %489 = vmatmul.mubr.f32.gmra.mrb[0].mxu0 %v193
        %v490 = vpop.f32.mrb[0].mxu0
        %v491 = vadd.f32 0.0, %v490
        %v492 = vpop.f32.mrb[0].mxu0
        %493 = vmatprep.mubr.f32.mxu0 0.0
        %494 = vmatmul.mubr.f32.gmra.mrb[0].mxu0 %v196
        %v495 = vpop.f32.mrb[0].mxu0
        %v496 = vadd.f32 0.0, %v495
        %v497 = vpop.f32.mrb[0].mxu0
        %498 = vmatprep.mubr.f32.mxu0 0.0
        %499 = vmatmul.mubr.f32.gmra.mrb[0].mxu0 %v199
        %v500 = vpop.f32.mrb[0].mxu0
        %v501 = vadd.f32 0.0, %v500
        %v502 = vpop.f32.mrb[0].mxu0
        %503 = vmatprep.mubr.f32.mxu0 0.0
        %504 = vmatmul.mubr.f32.gmra.mrb[0].mxu0 %v202
        %v505 = vpop.f32.mrb[0].mxu0
        %v506 = vadd.f32 0.0, %v505
        %v507 = vpop.f32.mrb[0].mxu0
        %508 = vmatprep.mubr.f32.mxu0 0.0
        %509 = vmatmul.mubr.f32.gmra.mrb[0].mxu0 %v205
        %v510 = vpop.f32.mrb[0].mxu0
        %v511 = vadd.f32 0.0, %v510
        %v512 = vpop.f32.mrb[0].mxu0
        %513 = vmatprep.mubr.f32.mxu0 0.0
        %514 = vmatmul.mubr.f32.gmra.mrb[0].mxu0 %v208
        %v515 = vpop.f32.mrb[0].mxu0
        %v516 = vadd.f32 0.0, %v515
        %v517 = vpop.f32.mrb[0].mxu0
        %518 = vdwg.mxu0
        %v519 = vmax.f32 %v409, %v491
        %v520 = vmax.f32 %v410, %v496
        %v521 = vmax.f32 %v411, %v501
        %v522 = vmax.f32 %v412, %v506
        %v523 = vmax.f32 %v413, %v511
        %v524 = vmax.f32 %v414, %v516
        %s525 = scalar_lea.vmem %s156, 192 [#allocation5]
        %v526 = vld [vmem:[%s525] sm:$0xff]
        %v527 = vld [vmem:[%s525 + $0x8] sm:$0xff]
        %v528 = vld [vmem:[%s525 + $0x10] sm:$0xff]
        %v529 = vld [vmem:[%s525 + $0x18] sm:$0xff]
        %v530 = vld [vmem:[%s525 + $0x20] sm:$0xff]
        %v531 = vld [vmem:[%s525 + $0x28] sm:$0xff]
        %v532 = vld [vmem:[%s525 + $0x30] sm:$0xff]
        %v533 = vld [vmem:[%s525 + $0x38] sm:$0xff]
        %534 = vmatprep.subr.mxu0 0.0
        %535 = vmatpush1.msra.mxu0 %v526
        %536 = vmatprep.subr.mxu0 0.0
        %537 = vmatpush1.msra.mxu0 %v527
        %538 = vmatprep.subr.mxu0 0.0
        %539 = vmatpush1.msra.mxu0 %v528
        %540 = vmatprep.subr.mxu0 0.0
        %541 = vmatpush1.msra.mxu0 %v529
        %542 = vmatprep.subr.mxu0 0.0
        %543 = vmatpush1.msra.mxu0 %v530
        %544 = vmatprep.subr.mxu0 0.0
        %545 = vmatpush1.msra.mxu0 %v531
        %546 = vmatprep.subr.mxu0 0.0
        %547 = vmatpush1.msra.mxu0 %v532
        %548 = vmatprep.subr.mxu0 0.0
        %549 = vmatpush1.msra.mxu0 %v533
        %550 = vmatprep.subr.mxu0 0.0
        %551 = vmatpush1.msra.mxu0 0.0
        %552 = vmatprep.subr.mxu0 0.0
        %553 = vmatpush1.msra.mxu0 0.0
        %554 = vmatprep.subr.mxu0 0.0
        %555 = vmatpush1.msra.mxu0 0.0
        %556 = vmatprep.subr.mxu0 0.0
        %557 = vmatpush1.msra.mxu0 0.0
        %558 = vmatprep.subr.mxu0 0.0
        %559 = vmatpush1.msra.mxu0 0.0
        %560 = vmatprep.subr.mxu0 0.0
        %561 = vmatpush1.msra.mxu0 0.0
        %562 = vmatprep.subr.mxu0 0.0
        %563 = vmatpush1.msra.mxu0 0.0
        %564 = vmatprep.subr.mxu0 0.0
        %565 = vmatpush1.msra.mxu0 0.0
        %566 = vmatprep.subr.mxu0 0.0
        %567 = vmatpush1.msra.mxu0 0.0
        %568 = vmatprep.subr.mxu0 0.0
        %569 = vmatpush1.msra.mxu0 0.0
        %570 = vmatprep.subr.mxu0 0.0
        %571 = vmatpush1.msra.mxu0 0.0
        %572 = vmatprep.subr.mxu0 0.0
        %573 = vmatpush1.msra.mxu0 0.0
        %574 = vmatprep.subr.mxu0 0.0
        %575 = vmatpush1.msra.mxu0 0.0
        %576 = vmatprep.subr.mxu0 0.0
        %577 = vmatpush1.msra.mxu0 0.0
        %578 = vmatprep.subr.mxu0 0.0
        %579 = vmatpush1.msra.mxu0 0.0
        %580 = vmatprep.subr.mxu0 0.0
        %581 = vmatpush1.msra.mxu0 0.0
        %582 = vmatprep.subr.mxu0 0.0
        %583 = vmatpush1.msra.mxu0 0.0
        %584 = vmatprep.subr.mxu0 0.0
        %585 = vmatpush1.msra.mxu0 0.0
        %586 = vmatprep.subr.mxu0 0.0
        %587 = vmatpush1.msra.mxu0 0.0
        %588 = vmatprep.subr.mxu0 0.0
        %589 = vmatpush1.msra.mxu0 0.0
        %590 = vmatprep.subr.mxu0 0.0
        %591 = vmatpush1.msra.mxu0 0.0
        %592 = vmatprep.subr.mxu0 0.0
        %593 = vmatpush1.msra.mxu0 0.0
        %594 = vmatprep.subr.mxu0 0.0
        %595 = vmatpush1.msra.mxu0 0.0
        %596 = vmatprep.subr.mxu0 0.0
        %597 = vmatpush1.msra.mxu0 0.0
        %598 = vmatprep.mubr.f32.mxu0 0.0
        %599 = vmatmul.mubr.f32.gmra.mrb[0].mxu0 %v193
        %v600 = vpop.f32.mrb[0].mxu0
        %v601 = vadd.f32 0.0, %v600
        %v602 = vpop.f32.mrb[0].mxu0
        %603 = vmatprep.mubr.f32.mxu0 0.0
        %604 = vmatmul.mubr.f32.gmra.mrb[0].mxu0 %v196
        %v605 = vpop.f32.mrb[0].mxu0
        %v606 = vadd.f32 0.0, %v605
        %v607 = vpop.f32.mrb[0].mxu0
        %608 = vmatprep.mubr.f32.mxu0 0.0
        %609 = vmatmul.mubr.f32.gmra.mrb[0].mxu0 %v199
        %v610 = vpop.f32.mrb[0].mxu0
        %v611 = vadd.f32 0.0, %v610
        %v612 = vpop.f32.mrb[0].mxu0
        %613 = vmatprep.mubr.f32.mxu0 0.0
        %614 = vmatmul.mubr.f32.gmra.mrb[0].mxu0 %v202
        %v615 = vpop.f32.mrb[0].mxu0
        %v616 = vadd.f32 0.0, %v615
        %v617 = vpop.f32.mrb[0].mxu0
        %618 = vmatprep.mubr.f32.mxu0 0.0
        %619 = vmatmul.mubr.f32.gmra.mrb[0].mxu0 %v205
        %v620 = vpop.f32.mrb[0].mxu0
        %v621 = vadd.f32 0.0, %v620
        %v622 = vpop.f32.mrb[0].mxu0
        %623 = vmatprep.mubr.f32.mxu0 0.0
        %624 = vmatmul.mubr.f32.gmra.mrb[0].mxu0 %v208
        %v625 = vpop.f32.mrb[0].mxu0
        %v626 = vadd.f32 0.0, %v625
        %v627 = vpop.f32.mrb[0].mxu0
        %628 = vdwg.mxu0
        %v629 = vmax.f32 %v519, %v601
        %v630 = vmax.f32 %v520, %v606
        %v631 = vmax.f32 %v521, %v611
        %v632 = vmax.f32 %v522, %v616
        %v633 = vmax.f32 %v523, %v621
        %v634 = vmax.f32 %v524, %v626
        %v635 = vlaneseq
        %v636 = vshrl.u32 %v635, 7
        %v637 = vadd.s32 %v636, 8
        %v638 = vadd.s32 %v636, 16
        %v639 = vadd.s32 %v636, 24
        %v640 = vadd.s32 %v636, 32
        %v641 = vadd.s32 %v636, 40
        %vm642 = vcmp.eq.s32.totalorder %v636, 40
        %vm643 = vcmp.eq.s32.totalorder %v637, 40
        %vm644 = vcmp.eq.s32.totalorder %v638, 40
        %vm645 = vcmp.eq.s32.totalorder %v639, 40
        %vm646 = vcmp.eq.s32.totalorder %v640, 40
        %vm647 = vcmp.eq.s32.totalorder %v641, 40
        %v648 = vsel %vm642, 1.0, %v629
        %v649 = vsel %vm643, 1.0, %v630
        %v650 = vsel %vm644, 1.0, %v631
        %v651 = vsel %vm645, 1.0, %v632
        %v652 = vsel %vm646, 1.0, %v633
        %v653 = vsel %vm647, 1.0, %v634
        %654 = vst.msk [vmem:[%s176] sm:$0xff] %vm191, %v648
        %655 = vst.msk [vmem:[%s176 + $0x8] sm:$0xff] %vm191, %v649
        %656 = vst.msk [vmem:[%s176 + $0x10] sm:$0xff] %vm191, %v650
        %657 = vst.msk [vmem:[%s176 + $0x18] sm:$0xff] %vm191, %v651
        %658 = vst.msk [vmem:[%s176 + $0x20] sm:$0xff] %vm191, %v652
        %659 = vst.msk [vmem:[%s176 + $0x28] sm:$0xff] %vm191, %v653
        %s660 = sand.u32 %s75, 1
        %s661 = scalar_lea.sflag [#allocation4], %s660
        %s662 = sand.u32 %s75, 1
        %s663 = smul.addr %s662, 48
        %s664 = scalar_lea.vmem [#allocation7], %s663
        // Predicated region
        $region37: #{tpu_custom_call.1} parent=27 // pred_check
          %p665 = pneg %p85
        $region38: #{tpu_custom_call.1} parent=27 // pred_check_branch
          %667 = sbr.rel (%p665) target = $region40
        $region39: #{tpu_custom_call.1} parent=27 // pred_region
          %s669 = ssub.s32 768, 768
          %670 = vsyncadd %s661, %s669
          %s671 = smul.addr %s20, 6
          %s672 = smul.addr %s671, 128
          %s673 = scalar_lea.hbm %s2, %s672
          %s674 = sshll.u32 %s664, 4
          %s675 = int_to_ptr.vmem [resolvable:$true] %s674
          %680 = dma.vmem_to_hbm [thread:$0]  %s675, 768, %s673, %s661, 128, 128, 8
        $region40: #{tpu_custom_call.1} parent=27 // pred_fallthru
          _
      $region28: #{tpu_custom_call.1} parent=5 // pred_fallthru
        _
      %p681 = scmp.le.s32.totalorder 2, %s15
      // Predicated region
      $region41: #{tpu_custom_call.1} parent=5 // pred_check
        %p682 = pneg %p681
      $region42: #{tpu_custom_call.1} parent=5 // pred_check_branch
        %684 = sbr.rel (%p682) target = $region44
      $region43: #{tpu_custom_call.1} parent=5 // pred_region
        %s685 = ssub.s32 %s15, 2
        // Predicated region
        $region45: #{tpu_custom_call.1} parent=43 // pred_check
          %p686 = pneg %p91
        $region46: #{tpu_custom_call.1} parent=43 // pred_check_branch
          %688 = sbr.rel (%p686) target = $region48
        $region47: #{tpu_custom_call.1} parent=43 // pred_region
          %s689 = sand.u32 %s76, 1
          %s690 = scalar_lea.sflag [#allocation4], %s689
          %s691 = sand.u32 %s76, 1
          %s692 = smul.addr %s691, 48
          %s693 = scalar_lea.vmem [#allocation7], %s692
          %694 = dma.done %s690, 768
        $region48: #{tpu_custom_call.1} parent=43 // pred_fallthru
          _
      $region44: #{tpu_custom_call.1} parent=5 // pred_fallthru
        _
    $region6: #{tpu_custom_call.1} parent=1 // loop_footer
      %s19 = sadd.s32 1, %s15
    $region7: #{tpu_custom_call.1} parent=1 // loop_footer_branch
      %14 = sbr.rel target = $region3
    $region8: #{tpu_custom_call.1} parent=1 // loop_exit
      _
    %695 = vsyncpa [#allocation3], 1
    %s696 = scalar_lea.sflag [#allocation3], 1
    %697 = vsyncpa %s696, 1
    %698 = vsyncpa [#allocation6], 1
    %s699 = scalar_lea.sflag [#allocation6], 1
    %700 = vsyncpa %s699, 1
    %701 = vsyncpa [#allocation4], 1
    %s702 = scalar_lea.sflag [#allocation4], 1
    %703 = vsyncpa %s702, 1

</llo_original>
